<compile_context>
chip_gen: v5e
topology: v5e:2x2
jax: 0.10.0
libtpu: 0.0.40
codegen_flags: <defaults>
</compile_context>

<pallas_src>
import jax
import jax.numpy as jnp
from jax.experimental import pallas as pl
from jax.experimental.pallas import tpu as pltpu


def _mish_kernel(x_ref, o_ref):
    xf = x_ref[...].astype(jnp.float32)
    # tanh(softplus(x)) = (e^2 + 2e) / (e^2 + 2e + 2),  e = exp(x).
    # Clamp x at 20: for x > 20 the ratio is 1.0 to f32 precision (mish(x)=x),
    # and the clamp prevents exp overflow -> inf/inf = NaN.
    e = jnp.exp(jnp.minimum(xf, 20.0))
    num = e * (e + 2.0)
    den = num + 2.0
    # EUP approximate reciprocal (separate VLIW slot) + one Newton-Raphson
    # refinement step -> ~f32 accuracy without a second transcendental.
    r = pl.reciprocal(den, approx=True)
    r = r * (2.0 - den * r)
    o_ref[...] = (xf * num * r).astype(o_ref.dtype)


# ~2 MiB per block: in+out double-buffered = 8 MiB, safe on v5e/v6e/v7x.
_TARGET_BLOCK_BYTES = 2 * 1024 * 1024


def mish(x: jax.Array) -> jax.Array:
    """Elementwise Mish. Any shape/dtype; computes in f32, returns x.dtype."""
    orig_shape = x.shape
    orig_dtype = x.dtype
    n = x.size
    if n == 0:
        return x

    itemsize = jnp.dtype(orig_dtype).itemsize

    # Flatten; pad only up to a 128-lane boundary when strictly necessary.
    x_flat = jnp.ravel(x)
    pad = (-n) % 128
    if pad:
        x_flat = jnp.pad(x_flat, (0, pad))
    n_p = n + pad

    # Widest lane-dense minor dim that divides the flat length.
    lanes = 128
    for cand in (4096, 2048, 1024, 512, 256):
        if n_p % cand == 0:
            lanes = cand
            break
    rows = n_p // lanes
    x2d = x_flat.reshape(rows, lanes)

    # Block rows: ~2 MiB footprint, multiple of 16 (bf16 sublane packing),
    # capped at the full row count (full-dim blocks are always legal).
    tm = (_TARGET_BLOCK_BYTES // (lanes * itemsize)) // 16 * 16
    tm = max(16, tm)
    tm = min(tm, rows)
    grid = (pl.cdiv(rows, tm),)  # partial last block is masked by Pallas

    out2d = pl.pallas_call(
        _mish_kernel,
        out_shape=jax.ShapeDtypeStruct((rows, lanes), orig_dtype),
        grid_spec=pltpu.PrefetchScalarGridSpec(
            num_scalar_prefetch=0,
            grid=grid,
            in_specs=[pl.BlockSpec((tm, lanes), lambda i: (i, 0))],
            out_specs=pl.BlockSpec((tm, lanes), lambda i: (i, 0)),
        ),
        compiler_params=pltpu.CompilerParams(
            dimension_semantics=("parallel",),  # shard grid across TCs on v7x
        ),
    )(x2d)

    out_flat = out2d.reshape(-1)
    if pad:
        out_flat = out_flat[:n]
    return out_flat.reshape(orig_shape)


def _mish_ref(x):
    xf = x.astype(jnp.float32)
    sp = jnp.maximum(xf, 0.0) + jnp.log1p(jnp.exp(-jnp.abs(xf)))
    return (xf * jnp.tanh(sp)).astype(x.dtype)


if __name__ == "__main__":
    key = jax.random.PRNGKey(0)

    # Primary shape implied by the module context: NCHW (2, 4, 16, 16), f32.
    x = jax.random.normal(key, (2, 4, 16, 16), dtype=jnp.float32) * 3.0
    y = jax.block_until_ready(mish(x))
    assert y.shape == x.shape and y.dtype == x.dtype
    assert jnp.allclose(y, _mish_ref(x), atol=1e-4, rtol=1e-4), "f32 mismatch"

    # Unaligned size -> exercises the 128-lane pad + ragged-tail path.
    x2 = jax.random.normal(jax.random.PRNGKey(1), (3, 5, 7, 11), dtype=jnp.float32) * 3.0
    y2 = jax.block_until_ready(mish(x2))
    assert jnp.allclose(y2, _mish_ref(x2), atol=1e-4, rtol=1e-4), "ragged mismatch"

    # bf16 path (compute in f32, cast back).
    x3 = (jax.random.normal(jax.random.PRNGKey(2), (2, 4, 16, 16)) * 3.0).astype(jnp.bfloat16)
    y3 = jax.block_until_ready(mish(x3))
    assert y3.dtype == jnp.bfloat16
    assert jnp.allclose(y3.astype(jnp.float32), _mish_ref(x3).astype(jnp.float32),
                        atol=2e-2, rtol=2e-2), "bf16 mismatch"

    print("KERNEL_OK")
</pallas_src>

<mosaic_0001>
module attributes {stable_mosaic.version = 11 : i64} {
  func.func @_mish_kernel(%arg0: i32, %arg1: memref<1x2048xf32, #tpu.memory_space<vmem>>, %arg2: memref<1x2048xf32, #tpu.memory_space<vmem>>) attributes {dimension_semantics = [#tpu.dimension_semantics<parallel>], iteration_bounds = array<i64: 1>, scalar_prefetch = 0 : i64, scratch_operands = 0 : i64, tpu.core_type = #tpu.core_type<tc>, window_params = [{transform_indices = @transform_0, window_bounds = array<i64: 1, 2048>}, {transform_indices = @transform_1, window_bounds = array<i64: 1, 2048>}]} {
    %c0 = arith.constant 0 : index
    %c0_0 = arith.constant 0 : index
    %0 = vector.load %arg1[%c0, %c0_0] : memref<1x2048xf32, #tpu.memory_space<vmem>>, vector<1x2048xf32>
    %cst = arith.constant 2.000000e+01 : f32
    %1 = vector.broadcast %cst : f32 to vector<1x2048xf32>
    %2 = arith.minimumf %0, %1 : vector<1x2048xf32>
    %3 = math.exp %2 : vector<1x2048xf32>
    %cst_1 = arith.constant 2.000000e+00 : f32
    %4 = vector.broadcast %cst_1 : f32 to vector<1x2048xf32>
    %5 = arith.addf %3, %4 : vector<1x2048xf32>
    %6 = arith.mulf %3, %5 : vector<1x2048xf32>
    %cst_2 = arith.constant 2.000000e+00 : f32
    %7 = vector.broadcast %cst_2 : f32 to vector<1x2048xf32>
    %8 = arith.addf %6, %7 : vector<1x2048xf32>
    %9 = tpu.reciprocal %8 {approx = true} : vector<1x2048xf32> -> vector<1x2048xf32>
    %10 = arith.mulf %8, %9 : vector<1x2048xf32>
    %cst_3 = arith.constant 2.000000e+00 : f32
    %11 = vector.broadcast %cst_3 : f32 to vector<1x2048xf32>
    %12 = arith.subf %11, %10 : vector<1x2048xf32>
    %13 = arith.mulf %9, %12 : vector<1x2048xf32>
    %14 = arith.mulf %0, %6 : vector<1x2048xf32>
    %15 = arith.mulf %14, %13 : vector<1x2048xf32>
    %c0_4 = arith.constant 0 : index
    %c0_5 = arith.constant 0 : index
    %16 = vector.load %arg2[%c0_4, %c0_5] : memref<1x2048xf32, #tpu.memory_space<vmem>>, vector<1x2048xf32>
    tpu.vector_store %arg2[%c0_4, %c0_5], %15 {strides = array<i32>} : memref<1x2048xf32, #tpu.memory_space<vmem>>, vector<1x2048xf32>,
    return
  }
  func.func @transform_0(%arg0: i32) -> (i32, i32) {
    %c0_i32 = arith.constant 0 : i32
    %c0_i32_0 = arith.constant 0 : i32
    return %arg0, %c0_i32 : i32, i32
  }
  func.func @transform_1(%arg0: i32) -> (i32, i32) {
    %c0_i32 = arith.constant 0 : i32
    %c0_i32_0 = arith.constant 0 : i32
    return %arg0, %c0_i32 : i32, i32
  }
}

</mosaic_0001>

<llo_original>
// kernel: tpu_custom_call.1
$region0: #{tpu_custom_call.1}
  #allocation0 [shape = 'u32[]', space=smem, size = 0x4, offset = 0x4, fixed_abs, tag = 'smem constant byte address 0x4 - core index']
  #allocation1 [shape = 'u32[72,128]{1,0:T(1,128)}', space=vmem, size = 0x9000, scoped, tag = 'internal scratch']
  %s0 = inlined_call_operand.hbm [shape: f32[1,2048], index: 0, kind: input, shape index: {}]
  %s1 = inlined_call_operand.hbm [shape: f32[1,2048], index: 1, kind: output, shape index: {}]
  %s2 = sld [smem:[#allocation0]]
  $region18: #{tpu_custom_call.1} parent=0
    _
  %s4 = ssub.s32 1, %s2
  %s5 = scalar_select 0, %s4, %s2
  $region1: #{tpu_custom_call.1} parent=0
    #allocation2 [shape = 'u8[8192]{0}', space=vmem, size = 0x2000, scoped, tag = 'input window, operand 0, single buffered']
    #allocation3 [shape = 's32[1]{0}', space=sflag, size = 0x4, scoped, tag = 'scoped memory for tpu_custom_call.1']
    #allocation4 [shape = 's32[1]{0}', space=sflag, size = 0x4, scoped, tag = 'scoped memory for tpu_custom_call.1']
    #allocation5 [shape = 'u8[8192]{0}', space=vmem, size = 0x2000, scoped, tag = 'output window, operand 0, single buffered']
    %6 = vsyncpa [#allocation3], 0
    %7 = vsyncpa [#allocation4], 0
    // Predicated region
    $region2: #{tpu_custom_call.1} parent=1 // pred_check
      _
    $region3: #{tpu_custom_call.1} parent=1 // pred_check_branch
      %9 = sbr.rel (0) target = $region5
    $region4: #{tpu_custom_call.1} parent=1 // pred_region
      %11 = vsyncadd [#allocation3], 0
      %s13 = sshll.u32 %s0, 4
      %s14 = int_to_ptr.hbm [resolvable:$true] %s13
      %s15 = sshll.u32 [#allocation2], 4
      %s16 = int_to_ptr.vmem [resolvable:$true] %s15
      %18 = dma.hbm_to_vmem [thread:$0]  %s14, 256, %s16, [#allocation3]
    $region5: #{tpu_custom_call.1} parent=1 // pred_fallthru
      _
    // Predicated region
    $region6: #{tpu_custom_call.1} parent=1 // pred_check
      _
    $region7: #{tpu_custom_call.1} parent=1 // pred_check_branch
      %20 = sbr.rel (0) target = $region9
    $region8: #{tpu_custom_call.1} parent=1 // pred_region
      %22 = dma.done [#allocation3], 256
    $region9: #{tpu_custom_call.1} parent=1 // pred_fallthru
      _
    %v23 = vld [vmem:[#allocation2] sm:$0xff]
    %v24 = vld [vmem:[#allocation2 + $0x8] sm:$0xff]
    %v25 = vmin.f32 %v23, 20.0
    %v26 = vmin.f32 %v24, 20.0
    %v27 = vmul.f32 %v25, 1.442695
    %v28 = vpow.pop %v27
    %v29 = vmul.f32 %v26, 1.442695
    %v30 = vpow.pop %v29
    %v31 = vadd.f32 %v28, 2.0
    %v32 = vadd.f32 %v30, 2.0
    %v33 = vmul.f32 %v28, %v31
    %v34 = vmul.f32 %v30, %v32
    %v35 = vadd.f32 %v33, 2.0
    %v36 = vadd.f32 %v34, 2.0
    %v37 = vrcp.pop %v35
    %v38 = vrcp.pop %v36
    %v39 = vmul.f32 %v35, %v37
    %v40 = vmul.f32 %v36, %v38
    %v41 = vsub.f32 2.0, %v39
    %v42 = vsub.f32 2.0, %v40
    %v43 = vmul.f32 %v37, %v41
    %v44 = vmul.f32 %v38, %v42
    %v45 = vmul.f32 %v23, %v33
    %v46 = vmul.f32 %v24, %v34
    %v47 = vmul.f32 %v45, %v43
    %v48 = vmul.f32 %v46, %v44
    %49 = vst [vmem:[#allocation5] sm:$0xff] %v47
    %50 = vst [vmem:[#allocation5 + $0x8] sm:$0xff] %v48
    // Predicated region
    $region10: #{tpu_custom_call.1} parent=1 // pred_check
      _
    $region11: #{tpu_custom_call.1} parent=1 // pred_check_branch
      %52 = sbr.rel (0) target = $region13
    $region12: #{tpu_custom_call.1} parent=1 // pred_region
      %54 = vsyncadd [#allocation4], 0
      %s56 = sshll.u32 [#allocation5], 4
      %s57 = int_to_ptr.vmem [resolvable:$true] %s56
      %s58 = sshll.u32 %s1, 4
      %s59 = int_to_ptr.hbm [resolvable:$true] %s58
      %61 = dma.vmem_to_hbm [thread:$0]  %s57, 256, %s59, [#allocation4]
    $region13: #{tpu_custom_call.1} parent=1 // pred_fallthru
      _
    // Predicated region
    $region14: #{tpu_custom_call.1} parent=1 // pred_check
      _
    $region15: #{tpu_custom_call.1} parent=1 // pred_check_branch
      %63 = sbr.rel (0) target = $region17
    $region16: #{tpu_custom_call.1} parent=1 // pred_region
      %65 = dma.done [#allocation4], 256
    $region17: #{tpu_custom_call.1} parent=1 // pred_fallthru
      _
    %66 = vsyncpa [#allocation3], 1
    %67 = vsyncpa [#allocation4], 1

</llo_original>
